<compile_context>
chip_gen: v7x
topology: tpu7x:2x2x1
jax: 0.10.0
libtpu: 0.0.40
codegen_flags: <defaults>
</compile_context>

<pallas_src>
import jax
import jax.numpy as jnp
from jax.experimental import pallas as pl
from jax.experimental.pallas import tpu as pltpu


def _round_up(n, m):
    return (n + m - 1) // m * m


def _autoencoder_kernel(params_ref, x_ref, o_ref):
    # params (SMEM, f32[14]), packed row-major in PyTorch (out, in) layout:
    #   [0..3]   Wt.weight : w00 w01 w10 w11
    #   [4..5]   Wt.bias   : b0 b1
    #   [6..7]   beta      : be0 be1
    #   [8..11]  R.weight  : r00 r01 r10 r11
    #   [12..13] R.bias    : c0 c1
    w00 = params_ref[0]
    w01 = params_ref[1]
    w10 = params_ref[2]
    w11 = params_ref[3]
    b0 = params_ref[4]
    b1 = params_ref[5]
    be0 = params_ref[6]
    be1 = params_ref[7]
    r00 = params_ref[8]
    r01 = params_ref[9]
    r10 = params_ref[10]
    r11 = params_ref[11]
    c0 = params_ref[12]
    c1 = params_ref[13]

    # x block: [2, TILE_B] lane-dense; two full-lane rows.
    x0 = x_ref[0:1, :].astype(jnp.float32)   # [1, TILE_B]
    x1 = x_ref[1:2, :].astype(jnp.float32)   # [1, TILE_B]

    # h = Wt(x) = x @ Wt^T + b  -> per-output-row scalar-broadcast FMAs (VPU).
    h0 = x0 * w00 + x1 * w01 + b0
    h1 = x0 * w10 + x1 * w11 + b1

    # Swish: h * sigmoid(beta * h)   (sigmoid goes to the otherwise-idle EUP).
    s0 = h0 * jax.nn.sigmoid(be0 * h0)
    s1 = h1 * jax.nn.sigmoid(be1 * h1)

    # out = R(s) = s @ R^T + c  -> VPU FMAs, lane-dense row stores.
    o_ref[0:1, :] = (s0 * r00 + s1 * r01 + c0).astype(o_ref.dtype)
    o_ref[1:2, :] = (s0 * r10 + s1 * r11 + c1).astype(o_ref.dtype)


def simple_untied_autoencoder_forward(x, wt_weight, wt_bias, beta, r_weight,
                                      r_bias, *, tile_b=None):
    """x: [B, 2]; weights in PyTorch nn.Linear layout (out, in); biases (out,)."""
    B, F = x.shape
    assert F == 2, "module is hard-wired to 2 features"

    # Pack the 14 parameter scalars into one small SMEM vector.
    params = jnp.concatenate([
        wt_weight.reshape(-1), wt_bias.reshape(-1),
        beta.reshape(-1),
        r_weight.reshape(-1), r_bias.reshape(-1),
    ]).astype(jnp.float32)

    # Lane-dense tiling of the batch axis. Keep tiles modest enough to be
    # VMEM-safe on v7x (64 MiB) while amortizing per-step grid overhead.
    if tile_b is None:
        tile_b = min(8192, _round_up(B, 128))
    b_pad = _round_up(B, tile_b)
    nb = b_pad // tile_b

    # [2, B_pad]: batch on the lane axis (zero-pad the tail; sliced off below).
    xt = jnp.pad(x.T, ((0, 0), (0, b_pad - B)))

    out_t = pl.pallas_call(
        _autoencoder_kernel,
        out_shape=jax.ShapeDtypeStruct((2, b_pad), x.dtype),
        grid=(nb,),
        in_specs=[
            pl.BlockSpec(memory_space=pltpu.MemorySpace.SMEM),   # params (14,)
            pl.BlockSpec((2, tile_b), lambda i: (0, i)),         # x, lane-dense
        ],
        out_specs=pl.BlockSpec((2, tile_b), lambda i: (0, i)),
        compiler_params=pltpu.CompilerParams(
            dimension_semantics=("parallel",)),
        cost_estimate=pl.CostEstimate(
            flops=20 * b_pad,            # 2 linears (8 each) + swish muls
            transcendentals=2 * b_pad,   # 2 sigmoids per batch row
            bytes_accessed=16 * b_pad,   # 8B read + 8B write per batch row
        ),
    )(params, xt)

    # Back to the module's [B, 2] layout (XLA-level glue, outside the kernel).
    return out_t[:, :B].T


def _reference_forward(x, wt_weight, wt_bias, beta, r_weight, r_bias):
    h = x @ wt_weight.T + wt_bias
    s = h * jax.nn.sigmoid(beta[None, :] * h)
    return s @ r_weight.T + r_bias


if __name__ == "__main__":
    key = jax.random.PRNGKey(0)
    k_x, k_rw, k_rb, k_ww, k_wb = jax.random.split(key, 5)

    B, F = 8, 2  # feature dim fixed at 2 by the module definition

    x = jax.random.normal(k_x, (B, F), dtype=jnp.float32)

    # Deterministic init mirroring uniform_(-1, 1) in the module's __init__.
    r_weight = jax.random.uniform(k_rw, (F, F), minval=-1.0, maxval=1.0)
    r_bias = jax.random.uniform(k_rb, (F,), minval=-1.0, maxval=1.0)
    wt_weight = jax.random.uniform(k_ww, (F, F), minval=-1.0, maxval=1.0)
    wt_bias = jax.random.uniform(k_wb, (F,), minval=-1.0, maxval=1.0)
    beta = jnp.ones((F,), dtype=jnp.float32)  # Swish(dim=2) -> beta init ones

    out = simple_untied_autoencoder_forward(x, wt_weight, wt_bias, beta,
                                            r_weight, r_bias)
    out = jax.block_until_ready(out)

    ref = _reference_forward(x, wt_weight, wt_bias, beta, r_weight, r_bias)
    assert out.shape == (B, F)
    assert jnp.allclose(out, ref, atol=1e-5, rtol=1e-5)

    print("KERNEL_OK")
</pallas_src>

<mosaic_0001>
module attributes {stable_mosaic.version = 11 : i64} {
  func.func @_autoencoder_kernel(%arg0: i32, %arg1: memref<14xf32, #tpu.memory_space<smem>>, %arg2: memref<2x128xf32, #tpu.memory_space<vmem>>, %arg3: memref<2x128xf32, #tpu.memory_space<vmem>>) attributes {dimension_semantics = [#tpu.dimension_semantics<parallel>], iteration_bounds = array<i64: 1>, scalar_prefetch = 0 : i64, scratch_operands = 0 : i64, tpu.core_type = #tpu.core_type<tc>, window_params = [{transform_indices = @transform_0, window_bounds = array<i64: 14>}, {transform_indices = @transform_1, window_bounds = array<i64: 2, 128>}, {transform_indices = @transform_2, window_bounds = array<i64: 2, 128>}]} {
    %c0 = arith.constant 0 : index
    %0 = memref.load %arg1[%c0] : memref<14xf32, #tpu.memory_space<smem>>
    %c1 = arith.constant 1 : index
    %1 = memref.load %arg1[%c1] : memref<14xf32, #tpu.memory_space<smem>>
    %c2 = arith.constant 2 : index
    %2 = memref.load %arg1[%c2] : memref<14xf32, #tpu.memory_space<smem>>
    %c3 = arith.constant 3 : index
    %3 = memref.load %arg1[%c3] : memref<14xf32, #tpu.memory_space<smem>>
    %c4 = arith.constant 4 : index
    %4 = memref.load %arg1[%c4] : memref<14xf32, #tpu.memory_space<smem>>
    %c5 = arith.constant 5 : index
    %5 = memref.load %arg1[%c5] : memref<14xf32, #tpu.memory_space<smem>>
    %c6 = arith.constant 6 : index
    %6 = memref.load %arg1[%c6] : memref<14xf32, #tpu.memory_space<smem>>
    %c7 = arith.constant 7 : index
    %7 = memref.load %arg1[%c7] : memref<14xf32, #tpu.memory_space<smem>>
    %c8 = arith.constant 8 : index
    %8 = memref.load %arg1[%c8] : memref<14xf32, #tpu.memory_space<smem>>
    %c9 = arith.constant 9 : index
    %9 = memref.load %arg1[%c9] : memref<14xf32, #tpu.memory_space<smem>>
    %c10 = arith.constant 10 : index
    %10 = memref.load %arg1[%c10] : memref<14xf32, #tpu.memory_space<smem>>
    %c11 = arith.constant 11 : index
    %11 = memref.load %arg1[%c11] : memref<14xf32, #tpu.memory_space<smem>>
    %c12 = arith.constant 12 : index
    %12 = memref.load %arg1[%c12] : memref<14xf32, #tpu.memory_space<smem>>
    %c13 = arith.constant 13 : index
    %13 = memref.load %arg1[%c13] : memref<14xf32, #tpu.memory_space<smem>>
    %c0_0 = arith.constant 0 : index
    %c0_1 = arith.constant 0 : index
    %14 = vector.load %arg2[%c0_0, %c0_1] : memref<2x128xf32, #tpu.memory_space<vmem>>, vector<1x128xf32>
    %c1_2 = arith.constant 1 : index
    %c0_3 = arith.constant 0 : index
    %15 = vector.load %arg2[%c1_2, %c0_3] : memref<2x128xf32, #tpu.memory_space<vmem>>, vector<1x128xf32>
    %16 = vector.broadcast %0 : f32 to vector<1x128xf32>
    %17 = arith.mulf %14, %16 : vector<1x128xf32>
    %18 = vector.broadcast %1 : f32 to vector<1x128xf32>
    %19 = arith.mulf %15, %18 : vector<1x128xf32>
    %20 = arith.addf %17, %19 : vector<1x128xf32>
    %21 = vector.broadcast %4 : f32 to vector<1x128xf32>
    %22 = arith.addf %20, %21 : vector<1x128xf32>
    %23 = vector.broadcast %2 : f32 to vector<1x128xf32>
    %24 = arith.mulf %14, %23 : vector<1x128xf32>
    %25 = vector.broadcast %3 : f32 to vector<1x128xf32>
    %26 = arith.mulf %15, %25 : vector<1x128xf32>
    %27 = arith.addf %24, %26 : vector<1x128xf32>
    %28 = vector.broadcast %5 : f32 to vector<1x128xf32>
    %29 = arith.addf %27, %28 : vector<1x128xf32>
    %30 = vector.broadcast %6 : f32 to vector<1x128xf32>
    %31 = arith.mulf %30, %22 : vector<1x128xf32>
    %32 = arith.negf %31 : vector<1x128xf32>
    %33 = math.exp %32 : vector<1x128xf32>
    %cst = arith.constant 1.000000e+00 : f32
    %34 = vector.broadcast %cst : f32 to vector<1x128xf32>
    %35 = arith.addf %34, %33 : vector<1x128xf32>
    %36 = arith.divf %34, %35 : vector<1x128xf32>
    %37 = arith.mulf %22, %36 : vector<1x128xf32>
    %38 = vector.broadcast %7 : f32 to vector<1x128xf32>
    %39 = arith.mulf %38, %29 : vector<1x128xf32>
    %40 = arith.negf %39 : vector<1x128xf32>
    %41 = math.exp %40 : vector<1x128xf32>
    %cst_4 = arith.constant 1.000000e+00 : f32
    %42 = vector.broadcast %cst_4 : f32 to vector<1x128xf32>
    %43 = arith.addf %42, %41 : vector<1x128xf32>
    %44 = arith.divf %42, %43 : vector<1x128xf32>
    %45 = arith.mulf %29, %44 : vector<1x128xf32>
    %46 = vector.broadcast %8 : f32 to vector<1x128xf32>
    %47 = arith.mulf %37, %46 : vector<1x128xf32>
    %48 = vector.broadcast %9 : f32 to vector<1x128xf32>
    %49 = arith.mulf %45, %48 : vector<1x128xf32>
    %50 = arith.addf %47, %49 : vector<1x128xf32>
    %51 = vector.broadcast %12 : f32 to vector<1x128xf32>
    %52 = arith.addf %50, %51 : vector<1x128xf32>
    %c0_5 = arith.constant 0 : index
    %c0_6 = arith.constant 0 : index
    %53 = vector.load %arg3[%c0_5, %c0_6] : memref<2x128xf32, #tpu.memory_space<vmem>>, vector<1x128xf32>
    tpu.vector_store %arg3[%c0_5, %c0_6], %52 {strides = array<i32>} : memref<2x128xf32, #tpu.memory_space<vmem>>, vector<1x128xf32>,
    %54 = vector.broadcast %10 : f32 to vector<1x128xf32>
    %55 = arith.mulf %37, %54 : vector<1x128xf32>
    %56 = vector.broadcast %11 : f32 to vector<1x128xf32>
    %57 = arith.mulf %45, %56 : vector<1x128xf32>
    %58 = arith.addf %55, %57 : vector<1x128xf32>
    %59 = vector.broadcast %13 : f32 to vector<1x128xf32>
    %60 = arith.addf %58, %59 : vector<1x128xf32>
    %c1_7 = arith.constant 1 : index
    %c0_8 = arith.constant 0 : index
    %61 = vector.load %arg3[%c1_7, %c0_8] : memref<2x128xf32, #tpu.memory_space<vmem>>, vector<1x128xf32>
    tpu.vector_store %arg3[%c1_7, %c0_8], %60 {strides = array<i32>} : memref<2x128xf32, #tpu.memory_space<vmem>>, vector<1x128xf32>,
    return
  }
  func.func @transform_0(%arg0: i32) -> i32 {
    %c0_i32 = arith.constant 0 : i32
    %c0_i32_0 = arith.constant 0 : i32
    return %c0_i32 : i32
  }
  func.func @transform_1(%arg0: i32) -> (i32, i32) {
    %c0_i32 = arith.constant 0 : i32
    %c0_i32_0 = arith.constant 0 : i32
    return %c0_i32, %arg0 : i32, i32
  }
  func.func @transform_2(%arg0: i32) -> (i32, i32) {
    %c0_i32 = arith.constant 0 : i32
    %c0_i32_0 = arith.constant 0 : i32
    return %c0_i32, %arg0 : i32, i32
  }
}

</mosaic_0001>

<llo_original>
// kernel: tpu_custom_call.1
$region0: #{tpu_custom_call.1}
  #allocation0 [shape = 'u32[]', space=smem, size = 0x4, offset = 0x4, fixed_abs, tag = 'smem constant byte address 0x4 - core index']
  #allocation1 [shape = 'u32[144,128]{1,0:T(1,128)}', space=vmem, size = 0x12000, scoped, tag = 'internal scratch']
  %s0 = inlined_call_operand.hbm [shape: f32[14], index: 0, kind: input, shape index: {}]
  %s1 = inlined_call_operand.vmem [shape: f32[2,128], index: 1, kind: input, shape index: {}]
  %s2 = inlined_call_operand.hbm [shape: f32[2,128], index: 2, kind: output, shape index: {}]
  %s3 = sld [smem:[#allocation0]]
  $region22: #{tpu_custom_call.1} parent=0
    _
  %s5 = ssub.s32 1, %s3
  %s6 = scalar_select 0, %s5, %s3
  $region1: #{tpu_custom_call.1} parent=0
    #allocation2 [shape = 'u8[512]{0}', space=smem, size = 0x200, scoped, tag = 'input window, operand 0, single buffered']
    #allocation3 [shape = 's32[1]{0}', space=sflag, size = 0x4, scoped, tag = 'scoped memory for tpu_custom_call.1']
    #allocation4 [shape = 's32[1]{0}', space=sflag, size = 0x4, scoped, tag = 'scoped memory for tpu_custom_call.1']
    #allocation5 [shape = 'u8[1024]{0}', space=vmem, size = 0x400, scoped, tag = 'output window, operand 0, single buffered']
    %7 = vsyncpa [#allocation4], 0
    %8 = vsyncpa [#allocation3], 0
    // Predicated region
    $region2: #{tpu_custom_call.1} parent=1 // pred_check
      _
    $region3: #{tpu_custom_call.1} parent=1 // pred_check_branch
      %10 = sbr.rel (0) target = $region5
    $region4: #{tpu_custom_call.1} parent=1 // pred_region
      %s12 = ssub.s32 16, 16
      %13 = vsyncadd [#allocation4], %s12
      %16 = dma.hbm_to_smem %s0, 16, [#allocation2], [#allocation4]
    $region5: #{tpu_custom_call.1} parent=1 // pred_fallthru
      _
    // Predicated region
    $region6: #{tpu_custom_call.1} parent=1 // pred_check
      _
    $region7: #{tpu_custom_call.1} parent=1 // pred_check_branch
      %18 = sbr.rel (0) target = $region9
    $region8: #{tpu_custom_call.1} parent=1 // pred_region
      _
    $region9: #{tpu_custom_call.1} parent=1 // pred_fallthru
      _
    // Predicated region
    $region10: #{tpu_custom_call.1} parent=1 // pred_check
      _
    $region11: #{tpu_custom_call.1} parent=1 // pred_check_branch
      %20 = sbr.rel (0) target = $region13
    $region12: #{tpu_custom_call.1} parent=1 // pred_region
      %21 = dma.done [#allocation4], 16
    $region13: #{tpu_custom_call.1} parent=1 // pred_fallthru
      _
    %22 = sfence
    %s23 = sld [smem:[#allocation2]]
    %s24 = sld [smem:[#allocation2 + $0x1]]
    %s25 = sld [smem:[#allocation2 + $0x2]]
    %s26 = sld [smem:[#allocation2 + $0x3]]
    %s27 = sld [smem:[#allocation2 + $0x4]]
    %s28 = sld [smem:[#allocation2 + $0x5]]
    %s29 = sld [smem:[#allocation2 + $0x6]]
    %s30 = sld [smem:[#allocation2 + $0x7]]
    %s31 = sld [smem:[#allocation2 + $0x8]]
    %s32 = sld [smem:[#allocation2 + $0x9]]
    %s33 = sld [smem:[#allocation2 + $0xa]]
    %s34 = sld [smem:[#allocation2 + $0xb]]
    %s35 = sld [smem:[#allocation2 + $0xc]]
    %s36 = sld [smem:[#allocation2 + $0xd]]
    %v37 = vld [vmem:[%s1] sm:$0x1]
    %v38 = vld [vmem:[%s1 + $0x1] sm:$0x1]
    %v39 = vstv %s23
    %v40 = vmul.f32 %v37, %v39
    %v41 = vstv %s24
    %v42 = vmul.f32 %v38, %v41
    %v43 = vadd.f32 %v40, %v42
    %v44 = vstv %s27
    %v45 = vadd.f32 %v43, %v44
    %v46 = vstv %s25
    %v47 = vmul.f32 %v37, %v46
    %v48 = vstv %s26
    %v49 = vmul.f32 %v38, %v48
    %v50 = vadd.f32 %v47, %v49
    %v51 = vstv %s28
    %v52 = vadd.f32 %v50, %v51
    %v53 = vstv %s29
    %v54 = vmul.f32 %v53, %v45
    %v55 = vxor.u32 %v54, 2147483648
    %v56 = vmul.f32 %v55, 1.442695
    %v57 = vpow.pop %v56
    %v58 = vadd.f32 %v57, 1.0
    %v59 = vrcp.pop %v58
    %v60 = vmul.f32 1.0, %v59
    %v61 = vmul.f32 %v45, %v60
    %v62 = vstv %s30
    %v63 = vmul.f32 %v62, %v52
    %v64 = vxor.u32 %v63, 2147483648
    %v65 = vmul.f32 %v64, 1.442695
    %v66 = vpow.pop %v65
    %v67 = vadd.f32 %v66, 1.0
    %v68 = vrcp.pop %v67
    %v69 = vmul.f32 1.0, %v68
    %v70 = vmul.f32 %v52, %v69
    %v71 = vstv %s31
    %v72 = vmul.f32 %v61, %v71
    %v73 = vstv %s32
    %v74 = vmul.f32 %v70, %v73
    %v75 = vadd.f32 %v72, %v74
    %v76 = vstv %s35
    %v77 = vadd.f32 %v75, %v76
    %78 = vst [vmem:[#allocation5] sm:$0x1] %v77
    %v79 = vstv %s33
    %v80 = vmul.f32 %v61, %v79
    %v81 = vstv %s34
    %v82 = vmul.f32 %v70, %v81
    %v83 = vadd.f32 %v80, %v82
    %v84 = vstv %s36
    %v85 = vadd.f32 %v83, %v84
    %86 = vst [vmem:[#allocation5 + $0x1] sm:$0x1] %v85
    // Predicated region
    $region14: #{tpu_custom_call.1} parent=1 // pred_check
      _
    $region15: #{tpu_custom_call.1} parent=1 // pred_check_branch
      %88 = sbr.rel (0) target = $region17
    $region16: #{tpu_custom_call.1} parent=1 // pred_region
      %s90 = ssub.s32 32, 32
      %91 = vsyncadd [#allocation3], %s90
      %s93 = sshll.u32 [#allocation5], 4
      %s94 = int_to_ptr.vmem [resolvable:$true] %s93
      %96 = dma.vmem_to_hbm [thread:$0]  %s94, 32, %s2, [#allocation3]
    $region17: #{tpu_custom_call.1} parent=1 // pred_fallthru
      _
    // Predicated region
    $region18: #{tpu_custom_call.1} parent=1 // pred_check
      _
    $region19: #{tpu_custom_call.1} parent=1 // pred_check_branch
      %98 = sbr.rel (0) target = $region21
    $region20: #{tpu_custom_call.1} parent=1 // pred_region
      %99 = dma.done [#allocation3], 32
    $region21: #{tpu_custom_call.1} parent=1 // pred_fallthru
      _
    %100 = vsyncpa [#allocation3], 1
    %101 = vsyncpa [#allocation4], 1

</llo_original>
